<compile_context>
chip_gen: v7x
topology: tpu7x:2x2x1
jax: 0.10.0
libtpu: 0.0.40
codegen_flags: <defaults>
</compile_context>

<pallas_src>
import jax
import jax.numpy as jnp
from jax import lax
from jax.experimental import pallas as pl
from jax.experimental.pallas import tpu as pltpu


# ----------------------------------------------------------------------------
# Helpers
# ----------------------------------------------------------------------------

def _round_up(x, m):
    return (x + m - 1) // m * m


def _vmem_limit_bytes():
    """Generation-aware scoped VMEM limit with headroom for compiler scratch."""
    cap = 64 * 1024 * 1024  # conservative default (v7x physical)
    try:
        info = pltpu.get_tpu_info()
        cap = int(getattr(info, "vmem_capacity_bytes", cap) or cap)
    except Exception:
        pass
    # 64 MiB chip -> 48 MiB limit; 128 MiB chip -> 112 MiB limit.
    return max(32 * 1024 * 1024, min(cap - 16 * 1024 * 1024, 112 * 1024 * 1024))


_TM_CANDIDATES = (16, 32, 64, 128, 256, 512)


def _pick_tm(B):
    """Pick (tm, B_pad) minimising #M tiles (== #weight streams), then padding."""
    best = None
    for tm in _TM_CANDIDATES:
        padded = _round_up(B, tm)
        key = (padded // tm, padded, -tm)
        if best is None or key < best[0]:
            best = (key, tm, padded)
    return best[1], best[2]


def _pick_tn(N_pad, m_tiles):
    if N_pad % 128 != 0:
        return N_pad                      # small N: full-dim block, no padding
    tn = next(c for c in (512, 256, 128) if N_pad % c == 0)
    # v7x: make sure there are >=2 parallel (M, N) tiles so the second
    # TensorCore has work when the M axis doesn't already provide it.
    if m_tiles * (N_pad // tn) == 1 and N_pad >= 256 and (N_pad // 2) % 128 == 0:
        tn = N_pad // 2
    return tn


def _pick_tk(K_pad, tm, tn, vmem_budget, itemsize):
    cands = [c for c in (2048, 1024, 512, 256, 128) if K_pad % c == 0]
    if not cands:
        cands = [K_pad]                   # K_pad < 128: full-dim block
    for tk in cands:
        # double-buffered bf16 input tiles + double-buffered f32 out + bias
        need = 2 * (tm * tk * itemsize + tn * tk * itemsize
                    + tn * 4 + tm * tn * 4)
        if need <= vmem_budget:
            return tk
    return cands[-1]


# ----------------------------------------------------------------------------
# Kernels
# ----------------------------------------------------------------------------

def _linear_relu_simple_kernel(x_ref, w_ref, b_ref, o_ref):
    # Whole-array blocks in VMEM; weight is native (N, K), contract last dims.
    acc = lax.dot_general(
        x_ref[...], w_ref[...],
        dimension_numbers=(((1,), (1,)), ((), ())),
        preferred_element_type=jnp.float32)
    o_ref[...] = jnp.maximum(acc + b_ref[...], 0.0)


def _linear_relu_tiled_kernel(x_ref, w_ref, b_ref, o_ref):
    # Grid = (M tiles, N tiles, K tiles); K innermost reduction ("arbitrary").
    k = pl.program_id(2)

    @pl.when(k == 0)
    def _():
        o_ref[...] = jnp.zeros_like(o_ref)

    # x (tm, tk) bf16 . w (tn, tk)^T bf16 -> f32, accumulated straight into
    # the resident f32 output block (its index_map ignores k) -- no scratch.
    o_ref[...] += lax.dot_general(
        x_ref[...], w_ref[...],
        dimension_numbers=(((1,), (1,)), ((), ())),
        preferred_element_type=jnp.float32)

    @pl.when(k == pl.num_programs(2) - 1)
    def _():
        o_ref[...] = jnp.maximum(o_ref[...] + b_ref[...], 0.0)


# ----------------------------------------------------------------------------
# Wrappers
# ----------------------------------------------------------------------------

def prepare_linear_params(weight, bias, *, compute_dtype=jnp.bfloat16):
    """One-time weight preprocessing (outside the per-call hot path).

    * Keeps the PyTorch-native (out_features, in_features) layout -- no
      transpose.
    * Casts to the MXU compute dtype exactly once.
    * Zero-pads only when needed: K up to a lane multiple (128); N only when
      N > 512 (otherwise tiles use the full N dim, so no padding / no extra
      weight bytes streamed per call).
    """
    N, K = weight.shape
    compute_dtype = jnp.dtype(compute_dtype)
    K_pad = _round_up(K, 128)
    N_pad = N if N <= 512 else _round_up(N, 128)

    w = weight.astype(compute_dtype)
    if (N_pad, K_pad) != (N, K):
        w = jnp.zeros((N_pad, K_pad), compute_dtype).at[:N, :K].set(w)
    b = jnp.zeros((1, N_pad), jnp.float32).at[0, :N].set(
        bias.astype(jnp.float32))
    return {"w": w, "b": b, "n": N, "k": K}


_SIMPLE_PATH_MAX_BYTES = 6 * 1024 * 1024


def my_model_forward(image, params, *, force_tiled=False, tile_hint=None):
    """image: (B, C, H, W) (or any (B, ...)); params from prepare_linear_params.

    Returns relu(flatten(image, 1) @ weight.T + bias) as (B, N) float32.
    """
    w, b = params["w"], params["b"]
    N, K = params["n"], params["k"]
    N_pad, K_pad = w.shape
    dt = w.dtype
    itemsize = jnp.dtype(dt).itemsize
    B = image.shape[0]

    x = image.reshape(B, -1)
    assert x.shape[1] == K, "image C*H*W must match weight in_features"
    x = x.astype(dt)

    vmem_limit = _vmem_limit_bytes()
    sub = 16 if dt == jnp.dtype(jnp.bfloat16) else 8

    total_bytes = ((_round_up(B, sub) * K_pad + N_pad * K_pad) * itemsize
                   + N_pad * 4 + _round_up(B, sub) * N_pad * 4)
    use_simple = (not force_tiled) and total_bytes <= _SIMPLE_PATH_MAX_BYTES

    if use_simple:
        # Single-shot kernel: whole arrays in VMEM, no grid / scratch / when.
        B_pad = _round_up(B, sub)
        if (B_pad, K_pad) != (B, K):
            x_p = jnp.zeros((B_pad, K_pad), dt).at[:B, :K].set(x)
        else:
            x_p = x
        out = pl.pallas_call(
            _linear_relu_simple_kernel,
            out_shape=jax.ShapeDtypeStruct((B_pad, N_pad), jnp.float32),
            compiler_params=pltpu.CompilerParams(vmem_limit_bytes=vmem_limit),
            cost_estimate=pl.CostEstimate(
                flops=2 * B_pad * K_pad * N_pad, transcendentals=0,
                bytes_accessed=total_bytes),
        )(x_p, w, b)
        return out[:B, :N]

    # ---- tiled (production-size) path ----
    if tile_hint is not None:
        tm, tn, tk = tile_hint
        B_pad = _round_up(B, tm)
    else:
        tm, B_pad = _pick_tm(B)
        tn = _pick_tn(N_pad, B_pad // tm)
        tk = _pick_tk(K_pad, tm, tn, vmem_limit // 2, itemsize)
    assert B_pad % tm == 0 and N_pad % tn == 0 and K_pad % tk == 0

    if (B_pad, K_pad) != (B, K):
        x_p = jnp.zeros((B_pad, K_pad), dt).at[:B, :K].set(x)
    else:
        x_p = x

    grid = (B_pad // tm, N_pad // tn, K_pad // tk)
    out = pl.pallas_call(
        _linear_relu_tiled_kernel,
        out_shape=jax.ShapeDtypeStruct((B_pad, N_pad), jnp.float32),
        grid=grid,
        in_specs=[
            pl.BlockSpec((tm, tk), lambda i, j, k: (i, k)),   # activations
            pl.BlockSpec((tn, tk), lambda i, j, k: (j, k)),   # weight (N, K) native
            pl.BlockSpec((1, tn), lambda i, j, k: (0, j)),    # bias row
        ],
        out_specs=pl.BlockSpec((tm, tn), lambda i, j, k: (i, j)),
        compiler_params=pltpu.CompilerParams(
            dimension_semantics=("parallel", "parallel", "arbitrary"),
            vmem_limit_bytes=vmem_limit),
        cost_estimate=pl.CostEstimate(
            flops=2 * B_pad * K_pad * N_pad, transcendentals=0,
            bytes_accessed=(x_p.size * itemsize + w.size * itemsize
                            + b.size * 4 + B_pad * N_pad * 4)),
    )(x_p, w, b)
    return out[:B, :N]


# ----------------------------------------------------------------------------
# References
# ----------------------------------------------------------------------------

def reference_forward(image, weight, bias, compute_dtype=jnp.bfloat16):
    # Same math as the kernel (bf16 operands, f32 accumulate / bias / relu).
    x = image.reshape(image.shape[0], -1).astype(compute_dtype)
    w = weight.T.astype(compute_dtype)
    y = jnp.dot(x, w, preferred_element_type=jnp.float32)
    y = y + bias.reshape(1, -1).astype(jnp.float32)
    return jnp.maximum(y, 0.0)


def reference_forward_f32(image, weight, bias):
    x = image.reshape(image.shape[0], -1)
    return jnp.maximum(x @ weight.T + bias.reshape(1, -1), 0.0)


# ----------------------------------------------------------------------------
# Demo / self-test
# ----------------------------------------------------------------------------

if __name__ == "__main__":
    # Small shapes consistent with the forward: batch=2, channels=4, 16x16.
    B, C, H, W = 2, 4, 16, 16
    K = C * H * W          # 1024 flattened features
    N = 32                 # hidden size of the first Linear child

    key = jax.random.PRNGKey(0)
    k_img, k_w, k_b = jax.random.split(key, 3)

    image = jax.random.normal(k_img, (B, C, H, W), dtype=jnp.float32)

    # Deterministic init mimicking nn.Linear default (uniform +/- 1/sqrt(K)).
    bound = 1.0 / (K ** 0.5)
    weight = jax.random.uniform(k_w, (N, K), minval=-bound, maxval=bound,
                                dtype=jnp.float32)   # PyTorch layout (out, in)
    bias = jax.random.uniform(k_b, (N,), minval=-bound, maxval=bound,
                              dtype=jnp.float32)

    # One-time weight preparation (cast to bf16, native layout, no transpose).
    params = prepare_linear_params(weight, bias)

    # Fast single-shot path (what the shipped shapes actually use).
    out_simple = jax.block_until_ready(my_model_forward(image, params))
    # Also exercise the tiled production path (multiple K steps) for coverage.
    out_tiled = jax.block_until_ready(
        my_model_forward(image, params, force_tiled=True,
                         tile_hint=(16, 32, 256)))

    ref_bf16 = reference_forward(image, weight, bias)
    ref_f32 = reference_forward_f32(image, weight, bias)

    for out in (out_simple, out_tiled):
        assert out.shape == (B, N)
        # Tight check vs. matching-precision reference.
        assert jnp.allclose(out, ref_bf16, atol=1e-4, rtol=1e-4), \
            "mismatch vs bf16 reference"
        # Sanity check vs. full-f32 math (bf16 operand rounding only).
        assert jnp.allclose(out, ref_f32, atol=3e-2, rtol=3e-2), \
            "mismatch vs f32 reference"

    print("KERNEL_OK")
</pallas_src>

<mosaic_0001>
module attributes {stable_mosaic.version = 11 : i64} {
  func.func @_linear_relu_simple_kernel(%arg0: memref<16x1024xbf16, #tpu.memory_space<vmem>>, %arg1: memref<32x1024xbf16, #tpu.memory_space<vmem>>, %arg2: memref<1x32xf32, #tpu.memory_space<vmem>>, %arg3: memref<16x32xf32, #tpu.memory_space<vmem>>) attributes {dimension_semantics = [], scalar_prefetch = 0 : i64, scratch_operands = 0 : i64, tpu.core_type = #tpu.core_type<tc>} {
    %c0 = arith.constant 0 : index
    %c0_0 = arith.constant 0 : index
    %0 = vector.load %arg0[%c0, %c0_0] : memref<16x1024xbf16, #tpu.memory_space<vmem>>, vector<16x1024xbf16>
    %c0_1 = arith.constant 0 : index
    %c0_2 = arith.constant 0 : index
    %1 = vector.load %arg1[%c0_1, %c0_2] : memref<32x1024xbf16, #tpu.memory_space<vmem>>, vector<32x1024xbf16>
    %cst = arith.constant dense<0.000000e+00> : vector<16x32xf32>
    %2 = tpu.matmul %0, %1, %cst {dimension_numbers = #tpu.dot_dimension_numbers<[1], [1], [0], [0], [0, 0, 1, 0], [], []>} : vector<16x1024xbf16>, vector<32x1024xbf16>, vector<16x32xf32> -> vector<16x32xf32>
    %c0_3 = arith.constant 0 : index
    %c0_4 = arith.constant 0 : index
    %3 = vector.load %arg2[%c0_3, %c0_4] : memref<1x32xf32, #tpu.memory_space<vmem>>, vector<1x32xf32>
    %4 = vector.broadcast %3 : vector<1x32xf32> to vector<16x32xf32>
    %5 = arith.addf %2, %4 : vector<16x32xf32>
    %cst_5 = arith.constant 0.000000e+00 : f32
    %6 = vector.broadcast %cst_5 : f32 to vector<16x32xf32>
    %7 = arith.maximumf %5, %6 : vector<16x32xf32>
    %c0_6 = arith.constant 0 : index
    %c0_7 = arith.constant 0 : index
    %8 = vector.load %arg3[%c0_6, %c0_7] : memref<16x32xf32, #tpu.memory_space<vmem>>, vector<16x32xf32>
    tpu.vector_store %arg3[%c0_6, %c0_7], %7 {strides = array<i32>} : memref<16x32xf32, #tpu.memory_space<vmem>>, vector<16x32xf32>,
    return
  }
}

</mosaic_0001>

<llo_original>
// kernel: tpu_custom_call.1
$region0: #{tpu_custom_call.1}
  #allocation0 [shape = 'u32[]', space=smem, size = 0x4, offset = 0x4, fixed_abs, tag = 'smem constant byte address 0x4 - core index']
  #allocation1 [shape = 'u32[144,128]{1,0:T(1,128)}', space=vmem, size = 0x12000, scoped, tag = 'internal scratch']
  %s0 = inlined_call_operand.hbm [shape: bf16[16,1024], index: 0, kind: input, shape index: {}]
  %s1 = inlined_call_operand.hbm [shape: bf16[32,1024], index: 1, kind: input, shape index: {}]
  %s2 = inlined_call_operand.vmem [shape: f32[1,32], index: 2, kind: input, shape index: {}]
  %s3 = inlined_call_operand.hbm [shape: f32[16,32], index: 3, kind: output, shape index: {}]
  %s4 = sld [smem:[#allocation0]]
  $region30: #{tpu_custom_call.1} parent=0
    _
  %s6 = ssub.s32 1, %s4
  %s7 = scalar_select 0, %s6, %s4
  $region1: #{tpu_custom_call.1} parent=0
    #allocation2 [shape = 'u8[32768]{0}', space=vmem, size = 0x8000, scoped, tag = 'input window, operand 0, single buffered']
    #allocation3 [shape = 's32[1]{0}', space=sflag, size = 0x4, scoped, tag = 'scoped memory for tpu_custom_call.1']
    #allocation4 [shape = 's32[1]{0}', space=sflag, size = 0x4, scoped, tag = 'scoped memory for tpu_custom_call.1']
    #allocation5 [shape = 'u8[65536]{0}', space=vmem, size = 0x10000, scoped, tag = 'input window, operand 1, single buffered']
    #allocation6 [shape = 's32[1]{0}', space=sflag, size = 0x4, scoped, tag = 'scoped memory for tpu_custom_call.1']
    #allocation7 [shape = 'u8[8192]{0}', space=vmem, size = 0x2000, scoped, tag = 'output window, operand 0, single buffered']
    %8 = vsyncpa [#allocation3], 0
    %9 = vsyncpa [#allocation6], 0
    %10 = vsyncpa [#allocation4], 0
    // Predicated region
    $region2: #{tpu_custom_call.1} parent=1 // pred_check
      _
    $region3: #{tpu_custom_call.1} parent=1 // pred_check_branch
      %12 = sbr.rel (0) target = $region5
    $region4: #{tpu_custom_call.1} parent=1 // pred_region
      %s14 = ssub.s32 1024, 1024
      %15 = vsyncadd [#allocation3], %s14
      %s16 = sshll.u32 [#allocation2], 4
      %s17 = int_to_ptr.vmem [resolvable:$true] %s16
      %22 = dma.hbm_to_vmem [thread:$0]  %s0, 1024, %s17, [#allocation3], 512, 512, 32
    $region5: #{tpu_custom_call.1} parent=1 // pred_fallthru
      _
    // Predicated region
    $region6: #{tpu_custom_call.1} parent=1 // pred_check
      _
    $region7: #{tpu_custom_call.1} parent=1 // pred_check_branch
      %24 = sbr.rel (0) target = $region9
    $region8: #{tpu_custom_call.1} parent=1 // pred_region
      %s26 = ssub.s32 2048, 2048
      %27 = vsyncadd [#allocation6], %s26
      %s28 = sshll.u32 [#allocation5], 4
      %s29 = int_to_ptr.vmem [resolvable:$true] %s28
      %34 = dma.hbm_to_vmem [thread:$0]  %s1, 2048, %s29, [#allocation6], 512, 512, 32
    $region9: #{tpu_custom_call.1} parent=1 // pred_fallthru
      _
    // Predicated region
    $region10: #{tpu_custom_call.1} parent=1 // pred_check
      _
    $region11: #{tpu_custom_call.1} parent=1 // pred_check_branch
      %36 = sbr.rel (0) target = $region13
    $region12: #{tpu_custom_call.1} parent=1 // pred_region
      _
    $region13: #{tpu_custom_call.1} parent=1 // pred_fallthru
      _
    // Predicated region
    $region14: #{tpu_custom_call.1} parent=1 // pred_check
      _
    $region15: #{tpu_custom_call.1} parent=1 // pred_check_branch
      %38 = sbr.rel (0) target = $region17
    $region16: #{tpu_custom_call.1} parent=1 // pred_region
      %39 = dma.done [#allocation3], 1024
    $region17: #{tpu_custom_call.1} parent=1 // pred_fallthru
      _
    // Predicated region
    $region18: #{tpu_custom_call.1} parent=1 // pred_check
      _
    $region19: #{tpu_custom_call.1} parent=1 // pred_check_branch
      %41 = sbr.rel (0) target = $region21
    $region20: #{tpu_custom_call.1} parent=1 // pred_region
      %42 = dma.done [#allocation6], 2048
    $region21: #{tpu_custom_call.1} parent=1 // pred_fallthru
      _
    %v44 = vld [vmem:[#allocation2] sm:$0xff]
    %v45 = vld [vmem:[#allocation2 + $0x8] sm:$0xff]
    %v46 = vld [vmem:[#allocation2 + $0x10] sm:$0xff]
    %v47 = vld [vmem:[#allocation2 + $0x18] sm:$0xff]
    %v48 = vld [vmem:[#allocation2 + $0x20] sm:$0xff]
    %v49 = vld [vmem:[#allocation2 + $0x28] sm:$0xff]
    %v50 = vld [vmem:[#allocation2 + $0x30] sm:$0xff]
    %v51 = vld [vmem:[#allocation2 + $0x38] sm:$0xff]
    %v52 = vld [vmem:[#allocation5] sm:$0xff]
    %v53 = vld [vmem:[#allocation5 + $0x8] sm:$0xff]
    %v54 = vld [vmem:[#allocation5 + $0x10] sm:$0xff]
    %v55 = vld [vmem:[#allocation5 + $0x18] sm:$0xff]
    %v56 = vld [vmem:[#allocation5 + $0x20] sm:$0xff]
    %v57 = vld [vmem:[#allocation5 + $0x28] sm:$0xff]
    %v58 = vld [vmem:[#allocation5 + $0x30] sm:$0xff]
    %v59 = vld [vmem:[#allocation5 + $0x38] sm:$0xff]
    %v60 = vld [vmem:[#allocation5 + $0x40] sm:$0xff]
    %v61 = vld [vmem:[#allocation5 + $0x48] sm:$0xff]
    %v62 = vld [vmem:[#allocation5 + $0x50] sm:$0xff]
    %v63 = vld [vmem:[#allocation5 + $0x58] sm:$0xff]
    %v64 = vld [vmem:[#allocation5 + $0x60] sm:$0xff]
    %v65 = vld [vmem:[#allocation5 + $0x68] sm:$0xff]
    %v66 = vld [vmem:[#allocation5 + $0x70] sm:$0xff]
    %v67 = vld [vmem:[#allocation5 + $0x78] sm:$0xff]
    %v68 = vld [vmem:[%s2] sm:$0x1]
    %v70 = vlaneseq
    %v71 = vshrl.u32 %v70, 7
    %v72 = vsub.s32 0, %v71
    %v73 = vrot.slane %v68, %v72
    %v83 = vunpack.c.l.b16 %v44
    %v84 = vunpack.c.h.b16 %v44
    %v85 = vunpack.c.l.b16 %v45
    %v86 = vunpack.c.h.b16 %v45
    %v87 = vunpack.c.l.b16 %v46
    %v88 = vunpack.c.h.b16 %v46
    %v89 = vunpack.c.l.b16 %v47
    %v90 = vunpack.c.h.b16 %v47
    %v91 = vunpack.c.l.b16 %v48
    %v92 = vunpack.c.h.b16 %v48
    %v93 = vunpack.c.l.b16 %v49
    %v94 = vunpack.c.h.b16 %v49
    %v95 = vunpack.c.l.b16 %v50
    %v96 = vunpack.c.h.b16 %v50
    %v97 = vunpack.c.l.b16 %v51
    %v98 = vunpack.c.h.b16 %v51
    %v99 = vpack.c.b16 %v91, %v83
    %v100 = vpack.c.b16 %v92, %v84
    %v101 = vpack.c.b16 %v93, %v85
    %v102 = vpack.c.b16 %v94, %v86
    %v103 = vpack.c.b16 %v95, %v87
    %v104 = vpack.c.b16 %v96, %v88
    %v105 = vpack.c.b16 %v97, %v89
    %v106 = vpack.c.b16 %v98, %v90
    %v131 = vunpack.c.l.b16 %v52
    %v132 = vunpack.c.h.b16 %v52
    %v133 = vunpack.c.l.b16 %v53
    %v134 = vunpack.c.h.b16 %v53
    %v135 = vunpack.c.l.b16 %v54
    %v136 = vunpack.c.h.b16 %v54
    %v137 = vunpack.c.l.b16 %v55
    %v138 = vunpack.c.h.b16 %v55
    %v139 = vunpack.c.l.b16 %v56
    %v140 = vunpack.c.h.b16 %v56
    %v141 = vunpack.c.l.b16 %v57
    %v142 = vunpack.c.h.b16 %v57
    %v143 = vunpack.c.l.b16 %v58
    %v144 = vunpack.c.h.b16 %v58
    %v145 = vunpack.c.l.b16 %v59
    %v146 = vunpack.c.h.b16 %v59
    %v147 = vunpack.c.l.b16 %v60
    %v148 = vunpack.c.h.b16 %v60
    %v149 = vunpack.c.l.b16 %v61
    %v150 = vunpack.c.h.b16 %v61
    %v151 = vunpack.c.l.b16 %v62
    %v152 = vunpack.c.h.b16 %v62
    %v153 = vunpack.c.l.b16 %v63
    %v154 = vunpack.c.h.b16 %v63
    %v155 = vunpack.c.l.b16 %v64
    %v156 = vunpack.c.h.b16 %v64
    %v157 = vunpack.c.l.b16 %v65
    %v158 = vunpack.c.h.b16 %v65
    %v159 = vunpack.c.l.b16 %v66
    %v160 = vunpack.c.h.b16 %v66
    %v161 = vunpack.c.l.b16 %v67
    %v162 = vunpack.c.h.b16 %v67
    %v163 = vpack.c.b16 %v139, %v131
    %v164 = vpack.c.b16 %v140, %v132
    %v165 = vpack.c.b16 %v141, %v133
    %v166 = vpack.c.b16 %v142, %v134
    %v167 = vpack.c.b16 %v143, %v135
    %v168 = vpack.c.b16 %v144, %v136
    %v169 = vpack.c.b16 %v145, %v137
    %v170 = vpack.c.b16 %v146, %v138
    %v171 = vpack.c.b16 %v155, %v147
    %v172 = vpack.c.b16 %v156, %v148
    %v173 = vpack.c.b16 %v157, %v149
    %v174 = vpack.c.b16 %v158, %v150
    %v175 = vpack.c.b16 %v159, %v151
    %v176 = vpack.c.b16 %v160, %v152
    %v177 = vpack.c.b16 %v161, %v153
    %v178 = vpack.c.b16 %v162, %v154
    %195 = vmatprep.subr.bf16.mxu0 %v164
    %196 = vmatpush1.bf16.xpose.msra.mxu0 %v163
    %197 = vmatprep.subr.bf16.mxu0 %v172
    %198 = vmatpush1.bf16.xpose.msra.mxu0 %v171
    %199 = vmatprep.subr.bf16.mxu0 0
    %200 = vmatpush1.bf16.xpose.msra.mxu0 0
    %201 = vmatprep.subr.bf16.mxu0 0
    %202 = vmatpush1.bf16.xpose.msra.mxu0 0
    %203 = vmatprep.subr.bf16.mxu0 0
    %204 = vmatpush1.bf16.xpose.msra.mxu0 0
    %205 = vmatprep.subr.bf16.mxu0 0
    %206 = vmatpush1.bf16.xpose.msra.mxu0 0
    %207 = vmatprep.subr.bf16.mxu0 0
    %208 = vmatpush1.bf16.xpose.msra.mxu0 0
    %209 = vmatprep.subr.bf16.mxu0 0
    %210 = vmatpush1.bf16.xpose.msra.mxu0 0
    %211 = vmatprep.subr.bf16.mxu0 0
    %212 = vmatpush1.bf16.xpose.msra.mxu0 0
    %213 = vmatprep.subr.bf16.mxu0 0
    %214 = vmatpush1.bf16.xpose.msra.mxu0 0
    %215 = vmatprep.subr.bf16.mxu0 0
    %216 = vmatpush1.bf16.xpose.msra.mxu0 0
    %217 = vmatprep.subr.bf16.mxu0 0
    %218 = vmatpush1.bf16.xpose.msra.mxu0 0
    %219 = vmatprep.subr.bf16.mxu0 0
    %220 = vmatpush1.bf16.xpose.msra.mxu0 0
    %221 = vmatprep.subr.bf16.mxu0 0
    %222 = vmatpush1.bf16.xpose.msra.mxu0 0
    %223 = vmatprep.subr.bf16.mxu0 0
    %224 = vmatpush1.bf16.xpose.msra.mxu0 0
    %225 = vmatprep.subr.bf16.mxu0 0
    %226 = vmatpush1.bf16.xpose.msra.mxu0 0
    %227 = vmatprep.mubr.bf16.mxu0 %v100
    %228 = vmatmul.mubr.bf16.gmra.mrb[0].mxu0 %v99
    %v229 = vpop.f32.mrb[0].mxu0
    %v230 = vadd.f32 %v73, %v229
    %v231 = vpop.f32.mrb[0].mxu0
    %v232 = vpop.f32.mrb[0].mxu0
    %v233 = vadd.f32 %v73, %v232
    %v234 = vpop.f32.mrb[0].mxu0
    %235 = vdwg.mxu0
    %236 = vmatprep.subr.bf16.mxu0 %v166
    %237 = vmatpush1.bf16.xpose.msra.mxu0 %v165
    %238 = vmatprep.subr.bf16.mxu0 %v174
    %239 = vmatpush1.bf16.xpose.msra.mxu0 %v173
    %240 = vmatprep.subr.bf16.mxu0 0
    %241 = vmatpush1.bf16.xpose.msra.mxu0 0
    %242 = vmatprep.subr.bf16.mxu0 0
    %243 = vmatpush1.bf16.xpose.msra.mxu0 0
    %244 = vmatprep.subr.bf16.mxu0 0
    %245 = vmatpush1.bf16.xpose.msra.mxu0 0
    %246 = vmatprep.subr.bf16.mxu0 0
    %247 = vmatpush1.bf16.xpose.msra.mxu0 0
    %248 = vmatprep.subr.bf16.mxu0 0
    %249 = vmatpush1.bf16.xpose.msra.mxu0 0
    %250 = vmatprep.subr.bf16.mxu0 0
    %251 = vmatpush1.bf16.xpose.msra.mxu0 0
    %252 = vmatprep.subr.bf16.mxu0 0
    %253 = vmatpush1.bf16.xpose.msra.mxu0 0
    %254 = vmatprep.subr.bf16.mxu0 0
    %255 = vmatpush1.bf16.xpose.msra.mxu0 0
    %256 = vmatprep.subr.bf16.mxu0 0
    %257 = vmatpush1.bf16.xpose.msra.mxu0 0
    %258 = vmatprep.subr.bf16.mxu0 0
    %259 = vmatpush1.bf16.xpose.msra.mxu0 0
    %260 = vmatprep.subr.bf16.mxu0 0
    %261 = vmatpush1.bf16.xpose.msra.mxu0 0
    %262 = vmatprep.subr.bf16.mxu0 0
    %263 = vmatpush1.bf16.xpose.msra.mxu0 0
    %264 = vmatprep.subr.bf16.mxu0 0
    %265 = vmatpush1.bf16.xpose.msra.mxu0 0
    %266 = vmatprep.subr.bf16.mxu0 0
    %267 = vmatpush1.bf16.xpose.msra.mxu0 0
    %268 = vmatprep.mubr.bf16.mxu0 %v102
    %269 = vmatmul.mubr.bf16.gmra.mrb[0].mxu0 %v101
    %v270 = vpop.f32.mrb[0].mxu0
    %v271 = vadd.f32 %v230, %v270
    %v272 = vpop.f32.mrb[0].mxu0
    %v273 = vpop.f32.mrb[0].mxu0
    %v274 = vadd.f32 %v233, %v273
    %v275 = vpop.f32.mrb[0].mxu0
    %276 = vdwg.mxu0
    %277 = vmatprep.subr.bf16.mxu0 %v168
    %278 = vmatpush1.bf16.xpose.msra.mxu0 %v167
    %279 = vmatprep.subr.bf16.mxu0 %v176
    %280 = vmatpush1.bf16.xpose.msra.mxu0 %v175
    %281 = vmatprep.subr.bf16.mxu0 0
    %282 = vmatpush1.bf16.xpose.msra.mxu0 0
    %283 = vmatprep.subr.bf16.mxu0 0
    %284 = vmatpush1.bf16.xpose.msra.mxu0 0
    %285 = vmatprep.subr.bf16.mxu0 0
    %286 = vmatpush1.bf16.xpose.msra.mxu0 0
    %287 = vmatprep.subr.bf16.mxu0 0
    %288 = vmatpush1.bf16.xpose.msra.mxu0 0
    %289 = vmatprep.subr.bf16.mxu0 0
    %290 = vmatpush1.bf16.xpose.msra.mxu0 0
    %291 = vmatprep.subr.bf16.mxu0 0
    %292 = vmatpush1.bf16.xpose.msra.mxu0 0
    %293 = vmatprep.subr.bf16.mxu0 0
    %294 = vmatpush1.bf16.xpose.msra.mxu0 0
    %295 = vmatprep.subr.bf16.mxu0 0
    %296 = vmatpush1.bf16.xpose.msra.mxu0 0
    %297 = vmatprep.subr.bf16.mxu0 0
    %298 = vmatpush1.bf16.xpose.msra.mxu0 0
    %299 = vmatprep.subr.bf16.mxu0 0
    %300 = vmatpush1.bf16.xpose.msra.mxu0 0
    %301 = vmatprep.subr.bf16.mxu0 0
    %302 = vmatpush1.bf16.xpose.msra.mxu0 0
    %303 = vmatprep.subr.bf16.mxu0 0
    %304 = vmatpush1.bf16.xpose.msra.mxu0 0
    %305 = vmatprep.subr.bf16.mxu0 0
    %306 = vmatpush1.bf16.xpose.msra.mxu0 0
    %307 = vmatprep.subr.bf16.mxu0 0
    %308 = vmatpush1.bf16.xpose.msra.mxu0 0
    %309 = vmatprep.mubr.bf16.mxu0 %v104
    %310 = vmatmul.mubr.bf16.gmra.mrb[0].mxu0 %v103
    %v311 = vpop.f32.mrb[0].mxu0
    %v312 = vadd.f32 %v271, %v311
    %v313 = vpop.f32.mrb[0].mxu0
    %v314 = vpop.f32.mrb[0].mxu0
    %v315 = vadd.f32 %v274, %v314
    %v316 = vpop.f32.mrb[0].mxu0
    %317 = vdwg.mxu0
    %318 = vmatprep.subr.bf16.mxu0 %v170
    %319 = vmatpush1.bf16.xpose.msra.mxu0 %v169
    %320 = vmatprep.subr.bf16.mxu0 %v178
    %321 = vmatpush1.bf16.xpose.msra.mxu0 %v177
    %322 = vmatprep.subr.bf16.mxu0 0
    %323 = vmatpush1.bf16.xpose.msra.mxu0 0
    %324 = vmatprep.subr.bf16.mxu0 0
    %325 = vmatpush1.bf16.xpose.msra.mxu0 0
    %326 = vmatprep.subr.bf16.mxu0 0
    %327 = vmatpush1.bf16.xpose.msra.mxu0 0
    %328 = vmatprep.subr.bf16.mxu0 0
    %329 = vmatpush1.bf16.xpose.msra.mxu0 0
    %330 = vmatprep.subr.bf16.mxu0 0
    %331 = vmatpush1.bf16.xpose.msra.mxu0 0
    %332 = vmatprep.subr.bf16.mxu0 0
    %333 = vmatpush1.bf16.xpose.msra.mxu0 0
    %334 = vmatprep.subr.bf16.mxu0 0
    %335 = vmatpush1.bf16.xpose.msra.mxu0 0
    %336 = vmatprep.subr.bf16.mxu0 0
    %337 = vmatpush1.bf16.xpose.msra.mxu0 0
    %338 = vmatprep.subr.bf16.mxu0 0
    %339 = vmatpush1.bf16.xpose.msra.mxu0 0
    %340 = vmatprep.subr.bf16.mxu0 0
    %341 = vmatpush1.bf16.xpose.msra.mxu0 0
    %342 = vmatprep.subr.bf16.mxu0 0
    %343 = vmatpush1.bf16.xpose.msra.mxu0 0
    %344 = vmatprep.subr.bf16.mxu0 0
    %345 = vmatpush1.bf16.xpose.msra.mxu0 0
    %346 = vmatprep.subr.bf16.mxu0 0
    %347 = vmatpush1.bf16.xpose.msra.mxu0 0
    %348 = vmatprep.subr.bf16.mxu0 0
    %349 = vmatpush1.bf16.xpose.msra.mxu0 0
    %350 = vmatprep.mubr.bf16.mxu0 %v106
    %351 = vmatmul.mubr.bf16.gmra.mrb[0].mxu0 %v105
    %v352 = vpop.f32.mrb[0].mxu0
    %v353 = vadd.f32 %v312, %v352
    %v354 = vpop.f32.mrb[0].mxu0
    %v355 = vpop.f32.mrb[0].mxu0
    %v356 = vadd.f32 %v315, %v355
    %v357 = vpop.f32.mrb[0].mxu0
    %358 = vdwg.mxu0
    %v359 = vmax.f32 %v353, 0.0
    %v360 = vmax.f32 %v356, 0.0
    %vm361 = vcmask 261120
    %362 = vst.msk [vmem:[#allocation7] sm:$0xff] %vm361, %v359
    %363 = vst.msk [vmem:[#allocation7 + $0x8] sm:$0xff] %vm361, %v360
    // Predicated region
    $region22: #{tpu_custom_call.1} parent=1 // pred_check
      _
    $region23: #{tpu_custom_call.1} parent=1 // pred_check_branch
      %365 = sbr.rel (0) target = $region25
    $region24: #{tpu_custom_call.1} parent=1 // pred_region
      %s367 = ssub.s32 256, 256
      %368 = vsyncadd [#allocation4], %s367
      %s369 = sshll.u32 [#allocation7], 4
      %s370 = int_to_ptr.vmem [resolvable:$true] %s369
      %375 = dma.vmem_to_hbm [thread:$0]  %s370, 256, %s3, [#allocation4], 128, 128, 8
    $region25: #{tpu_custom_call.1} parent=1 // pred_fallthru
      _
    // Predicated region
    $region26: #{tpu_custom_call.1} parent=1 // pred_check
      _
    $region27: #{tpu_custom_call.1} parent=1 // pred_check_branch
      %377 = sbr.rel (0) target = $region29
    $region28: #{tpu_custom_call.1} parent=1 // pred_region
      %378 = dma.done [#allocation4], 256
    $region29: #{tpu_custom_call.1} parent=1 // pred_fallthru
      _
    %379 = vsyncpa [#allocation3], 1
    %380 = vsyncpa [#allocation6], 1
    %381 = vsyncpa [#allocation4], 1

</llo_original>
